<compile_context>
chip_gen: v7x
topology: tpu7x:2x2x1
jax: 0.10.0
libtpu: 0.0.40
codegen_flags: <defaults>
</compile_context>

<pallas_src>
import math
from functools import partial

import jax
import jax.numpy as jnp
from jax.experimental import pallas as pl
from jax.experimental.pallas import tpu as pltpu


# --------------------------- fused forward kernel ----------------------------
def _mtand_fused_kernel(q_ref, k_ref, v_ref, m_ref,
                        wq_ref, bq_ref, wk_ref, bk_ref, wo_ref, bo_ref,
                        o_ref, *, num_heads, ek, scale):
    # Blocks (per batch element b):
    #   q_ref : (1, Tq, ET)   k_ref : (1, Tk, ET)
    #   v_ref : (1, Tk, dim)  m_ref : (1, Tk, dim)
    #   wq/wk : (ET, ET)      bq/bk : (1, ET)
    #   wo    : (H*dim, nh)   bo    : (1, nh)
    #   o_ref : (1, Tq, nh)
    Tq = q_ref.shape[1]
    Tk = k_ref.shape[1]
    dim = v_ref.shape[2]

    q_in = q_ref[0]                       # (Tq, ET)
    k_in = k_ref[0]                       # (Tk, ET)
    v = v_ref[0]                          # (Tk, dim)
    m = m_ref[0]                          # (Tk, dim)

    # Fused q / k projections (MXU).
    q = jnp.dot(q_in, wq_ref[...], preferred_element_type=jnp.float32) + bq_ref[...]
    k = jnp.dot(k_in, wk_ref[...], preferred_element_type=jnp.float32) + bk_ref[...]

    # Combined [mask*value | mask] operand: numerator AND denominator of the
    # per-feature masked softmax come out of a single MXU matmul per head.
    mm = jnp.concatenate([m * v, m], axis=1)                   # (Tk, 2*dim)

    # Fallback for features whose keys are ALL masked: PyTorch's -1e9 fill
    # makes that softmax column uniform -> plain mean of value over keys.
    # Hoisted + pre-broadcast once (not per unrolled head iteration).
    v_mean = jnp.broadcast_to(
        jnp.sum(v, axis=0, keepdims=True) * (1.0 / Tk), (Tq, dim))

    head_outs = []
    for h in range(num_heads):            # static unroll (H is small)
        qh = q[:, h * ek:(h + 1) * ek]    # (Tq, ek)
        kh = k[:, h * ek:(h + 1) * ek]    # (Tk, ek)

        # Scores and row-stabilized exponentials (2-D, lane axis = Tk).
        s = jnp.dot(qh, kh.T, preferred_element_type=jnp.float32) * scale   # (Tq, Tk)
        e = jnp.exp(s - jnp.max(s, axis=1, keepdims=True))                  # (Tq, Tk)

        # Per-feature masked softmax: one MXU matmul gives numerator|denominator.
        nd = jnp.dot(e, mm, preferred_element_type=jnp.float32)             # (Tq, 2*dim)
        numer = nd[:, :dim]
        denom = nd[:, dim:]
        valid = denom > 0.0
        head_outs.append(
            jnp.where(valid, numer / jnp.where(valid, denom, 1.0), v_mean))

    # (Tq, H*dim) head-major, exactly matching x.transpose(1,2).view(B,Tq,H*dim).
    x = jnp.concatenate(head_outs, axis=1)
    o_ref[0] = (jnp.dot(x, wo_ref[...], preferred_element_type=jnp.float32)
                + bo_ref[...]).astype(o_ref.dtype)


def multi_time_attention(params, query, key_, value, mask, *, num_heads, embed_time):
    """Fused mTAN forward: (B,Tq,ET),(B,Tk,ET),(B,Tk,dim),(B,Tk,dim) -> (B,Tq,nhidden)."""
    B, Tq, ET = query.shape
    _, Tk, dim = value.shape
    assert ET == embed_time
    ek = embed_time // num_heads
    nhidden = params["wo"].shape[1]

    kernel = partial(_mtand_fused_kernel, num_heads=num_heads, ek=ek,
                     scale=1.0 / math.sqrt(ek))

    return pl.pallas_call(
        kernel,
        out_shape=jax.ShapeDtypeStruct((B, Tq, nhidden), jnp.float32),
        grid=(B,),
        in_specs=[
            pl.BlockSpec((1, Tq, ET), lambda b: (b, 0, 0)),             # query
            pl.BlockSpec((1, Tk, ET), lambda b: (b, 0, 0)),             # key
            pl.BlockSpec((1, Tk, dim), lambda b: (b, 0, 0)),            # value
            pl.BlockSpec((1, Tk, dim), lambda b: (b, 0, 0)),            # mask
            pl.BlockSpec((ET, ET), lambda b: (0, 0)),                   # wq (resident)
            pl.BlockSpec((1, ET), lambda b: (0, 0)),                    # bq
            pl.BlockSpec((ET, ET), lambda b: (0, 0)),                   # wk
            pl.BlockSpec((1, ET), lambda b: (0, 0)),                    # bk
            pl.BlockSpec((num_heads * dim, nhidden), lambda b: (0, 0)), # wo
            pl.BlockSpec((1, nhidden), lambda b: (0, 0)),               # bo
        ],
        out_specs=pl.BlockSpec((1, Tq, nhidden), lambda b: (b, 0, 0)),
        compiler_params=pltpu.CompilerParams(
            dimension_semantics=("parallel",)),   # B >= 2 -> both v7x TCs busy
    )(query, key_, value, mask,
      params["wq"], params["bq"].reshape(1, ET),
      params["wk"], params["bk"].reshape(1, ET),
      params["wo"], params["bo"].reshape(1, nhidden))


# ------------------------------ params / reference ---------------------------
def init_params(key, input_dim, nhidden, embed_time, num_heads):
    """Deterministic nn.Linear-style init (weights stored as (in, out))."""
    ks = jax.random.split(key, 6)

    def lin(kw, kb, fan_in, fan_out):
        bound = 1.0 / math.sqrt(fan_in)
        w = jax.random.uniform(kw, (fan_in, fan_out), jnp.float32, -bound, bound)
        b = jax.random.uniform(kb, (fan_out,), jnp.float32, -bound, bound)
        return w, b

    wq, bq = lin(ks[0], ks[1], embed_time, embed_time)
    wk, bk = lin(ks[2], ks[3], embed_time, embed_time)
    wo, bo = lin(ks[4], ks[5], input_dim * num_heads, nhidden)
    return dict(wq=wq, bq=bq, wk=wk, bk=bk, wo=wo, bo=bo)


def reference(params, query, key_, value, mask, *, num_heads, embed_time):
    """Pure-JAX reference matching the PyTorch module (3-D masked softmax)."""
    B, Tq, _ = query.shape
    _, Tk, dim = value.shape
    ek = embed_time // num_heads
    q = (query @ params["wq"] + params["bq"]).reshape(B, Tq, num_heads, ek).transpose(0, 2, 1, 3)
    k = (key_ @ params["wk"] + params["bk"]).reshape(B, Tk, num_heads, ek).transpose(0, 2, 1, 3)
    scores = jnp.einsum("bhqe,bhke->bhqk", q, k) / math.sqrt(ek)
    s = jnp.broadcast_to(scores[..., None], (B, num_heads, Tq, Tk, dim))
    s = jnp.where(mask[:, None, None, :, :] == 0.0, -1e9, s)
    p = jax.nn.softmax(s, axis=-2)
    x = jnp.sum(p * value[:, None, None, :, :], axis=-2)              # (B,H,Tq,dim)
    x = x.transpose(0, 2, 1, 3).reshape(B, Tq, num_heads * dim)
    return x @ params["wo"] + params["bo"]


if __name__ == "__main__":
    # Small shapes consistent with the module's forward.
    B, Tq, Tk = 2, 8, 12
    input_dim, nhidden, embed_time, num_heads = 4, 32, 16, 2

    root = jax.random.PRNGKey(0)
    kp, kq, kk, kv, km = jax.random.split(root, 5)

    params = init_params(kp, input_dim, nhidden, embed_time, num_heads)
    query = jax.random.normal(kq, (B, Tq, embed_time), jnp.float32)
    key_ = jax.random.normal(kk, (B, Tk, embed_time), jnp.float32)
    value = jax.random.normal(kv, (B, Tk, input_dim), jnp.float32)
    mask = (jax.random.uniform(km, (B, Tk, input_dim)) > 0.3).astype(jnp.float32)
    # Exercise the all-masked-feature fallback path (PyTorch -1e9 fill -> mean).
    mask = mask.at[0, :, 1].set(0.0)

    out = multi_time_attention(params, query, key_, value, mask,
                               num_heads=num_heads, embed_time=embed_time)
    out = jax.block_until_ready(out)

    ref = reference(params, query, key_, value, mask,
                    num_heads=num_heads, embed_time=embed_time)
    assert out.shape == (B, Tq, nhidden), out.shape
    assert jnp.allclose(out, ref, rtol=1e-4, atol=1e-4), \
        f"max abs err {jnp.max(jnp.abs(out - ref))}"

    print("KERNEL_OK")
</pallas_src>

<mosaic_0001>
module attributes {stable_mosaic.version = 11 : i64} {
  func.func @_mtand_fused_kernel(%arg0: i32, %arg1: memref<1x8x16xf32, #tpu.memory_space<vmem>>, %arg2: memref<1x12x16xf32, #tpu.memory_space<vmem>>, %arg3: memref<1x12x4xf32, #tpu.memory_space<vmem>>, %arg4: memref<1x12x4xf32, #tpu.memory_space<vmem>>, %arg5: memref<16x16xf32, #tpu.memory_space<vmem>>, %arg6: memref<1x16xf32, #tpu.memory_space<vmem>>, %arg7: memref<16x16xf32, #tpu.memory_space<vmem>>, %arg8: memref<1x16xf32, #tpu.memory_space<vmem>>, %arg9: memref<8x32xf32, #tpu.memory_space<vmem>>, %arg10: memref<1x32xf32, #tpu.memory_space<vmem>>, %arg11: memref<1x8x32xf32, #tpu.memory_space<vmem>>) attributes {dimension_semantics = [#tpu.dimension_semantics<parallel>], iteration_bounds = array<i64: 2>, scalar_prefetch = 0 : i64, scratch_operands = 0 : i64, tpu.core_type = #tpu.core_type<tc>, window_params = [{transform_indices = @transform_0, window_bounds = array<i64: 1, 8, 16>}, {transform_indices = @transform_1, window_bounds = array<i64: 1, 12, 16>}, {transform_indices = @transform_2, window_bounds = array<i64: 1, 12, 4>}, {transform_indices = @transform_3, window_bounds = array<i64: 1, 12, 4>}, {pipeline_mode = #tpu.pipeline_mode<synchronous>, transform_indices = @transform_4, window_bounds = array<i64: 16, 16>}, {pipeline_mode = #tpu.pipeline_mode<synchronous>, transform_indices = @transform_5, window_bounds = array<i64: 1, 16>}, {pipeline_mode = #tpu.pipeline_mode<synchronous>, transform_indices = @transform_6, window_bounds = array<i64: 16, 16>}, {pipeline_mode = #tpu.pipeline_mode<synchronous>, transform_indices = @transform_7, window_bounds = array<i64: 1, 16>}, {pipeline_mode = #tpu.pipeline_mode<synchronous>, transform_indices = @transform_8, window_bounds = array<i64: 8, 32>}, {pipeline_mode = #tpu.pipeline_mode<synchronous>, transform_indices = @transform_9, window_bounds = array<i64: 1, 32>}, {transform_indices = @transform_10, window_bounds = array<i64: 1, 8, 32>}]} {
    %c0 = arith.constant 0 : index
    %c0_0 = arith.constant 0 : index
    %c0_1 = arith.constant 0 : index
    %0 = vector.load %arg1[%c0, %c0_0, %c0_1] : memref<1x8x16xf32, #tpu.memory_space<vmem>>, vector<1x8x16xf32>
    %1 = vector.shape_cast %0 : vector<1x8x16xf32> to vector<8x16xf32>
    %c0_2 = arith.constant 0 : index
    %c0_3 = arith.constant 0 : index
    %c0_4 = arith.constant 0 : index
    %2 = vector.load %arg2[%c0_2, %c0_3, %c0_4] : memref<1x12x16xf32, #tpu.memory_space<vmem>>, vector<1x12x16xf32>
    %3 = vector.shape_cast %2 : vector<1x12x16xf32> to vector<12x16xf32>
    %c0_5 = arith.constant 0 : index
    %c0_6 = arith.constant 0 : index
    %c0_7 = arith.constant 0 : index
    %4 = vector.load %arg3[%c0_5, %c0_6, %c0_7] : memref<1x12x4xf32, #tpu.memory_space<vmem>>, vector<1x12x4xf32>
    %5 = vector.shape_cast %4 : vector<1x12x4xf32> to vector<12x4xf32>
    %c0_8 = arith.constant 0 : index
    %c0_9 = arith.constant 0 : index
    %c0_10 = arith.constant 0 : index
    %6 = vector.load %arg4[%c0_8, %c0_9, %c0_10] : memref<1x12x4xf32, #tpu.memory_space<vmem>>, vector<1x12x4xf32>
    %7 = vector.shape_cast %6 : vector<1x12x4xf32> to vector<12x4xf32>
    %c0_11 = arith.constant 0 : index
    %c0_12 = arith.constant 0 : index
    %8 = vector.load %arg5[%c0_11, %c0_12] : memref<16x16xf32, #tpu.memory_space<vmem>>, vector<16x16xf32>
    %cst = arith.constant dense<0.000000e+00> : vector<8x16xf32>
    %9 = tpu.matmul %1, %8, %cst {dimension_numbers = #tpu.dot_dimension_numbers<[1], [0], [0], [1], [0, 0, 1, 1], [], []>} : vector<8x16xf32>, vector<16x16xf32>, vector<8x16xf32> -> vector<8x16xf32>
    %c0_13 = arith.constant 0 : index
    %c0_14 = arith.constant 0 : index
    %10 = vector.load %arg6[%c0_13, %c0_14] : memref<1x16xf32, #tpu.memory_space<vmem>>, vector<1x16xf32>
    %11 = vector.broadcast %10 : vector<1x16xf32> to vector<8x16xf32>
    %12 = arith.addf %9, %11 : vector<8x16xf32>
    %c0_15 = arith.constant 0 : index
    %c0_16 = arith.constant 0 : index
    %13 = vector.load %arg7[%c0_15, %c0_16] : memref<16x16xf32, #tpu.memory_space<vmem>>, vector<16x16xf32>
    %cst_17 = arith.constant dense<0.000000e+00> : vector<12x16xf32>
    %14 = tpu.matmul %3, %13, %cst_17 {dimension_numbers = #tpu.dot_dimension_numbers<[1], [0], [0], [1], [0, 0, 1, 1], [], []>} : vector<12x16xf32>, vector<16x16xf32>, vector<12x16xf32> -> vector<12x16xf32>
    %c0_18 = arith.constant 0 : index
    %c0_19 = arith.constant 0 : index
    %15 = vector.load %arg8[%c0_18, %c0_19] : memref<1x16xf32, #tpu.memory_space<vmem>>, vector<1x16xf32>
    %16 = vector.broadcast %15 : vector<1x16xf32> to vector<12x16xf32>
    %17 = arith.addf %14, %16 : vector<12x16xf32>
    %18 = arith.mulf %7, %5 : vector<12x4xf32>
    %19 = tpu.concatenate %18, %7 in 1 : vector<12x4xf32>, vector<12x4xf32> -> vector<12x8xf32>
    %cst_20 = arith.constant dense<0.000000e+00> : vector<4xf32>
    %20 = vector.multi_reduction <add>, %5, %cst_20 [0] : vector<12x4xf32> to vector<4xf32>
    %21 = vector.shape_cast %20 : vector<4xf32> to vector<1x4xf32>
    %cst_21 = arith.constant 0.0833333358 : f32
    %22 = vector.broadcast %cst_21 : f32 to vector<1x4xf32>
    %23 = arith.mulf %21, %22 : vector<1x4xf32>
    %24 = vector.shape_cast %23 : vector<1x4xf32> to vector<1x4xf32>
    %25 = vector.broadcast %24 : vector<1x4xf32> to vector<8x4xf32>
    %26 = vector.extract_strided_slice %12 {offsets = [0, 0], sizes = [8, 8], strides = [1, 1]} : vector<8x16xf32> to vector<8x8xf32>
    %27 = vector.extract_strided_slice %17 {offsets = [0, 0], sizes = [12, 8], strides = [1, 1]} : vector<12x16xf32> to vector<12x8xf32>
    %28 = tpu.transpose %27, [1, 0] : vector<12x8xf32> -> vector<8x12xf32>
    %cst_22 = arith.constant dense<0.000000e+00> : vector<8x12xf32>
    %29 = tpu.matmul %26, %28, %cst_22 {dimension_numbers = #tpu.dot_dimension_numbers<[1], [0], [0], [1], [0, 0, 1, 1], [], []>} : vector<8x8xf32>, vector<8x12xf32>, vector<8x12xf32> -> vector<8x12xf32>
    %cst_23 = arith.constant 0.353553385 : f32
    %30 = vector.broadcast %cst_23 : f32 to vector<8x12xf32>
    %31 = arith.mulf %29, %30 : vector<8x12xf32>
    %cst_24 = arith.constant dense<0xFF800000> : vector<8xf32>
    %32 = vector.multi_reduction <maximumf>, %31, %cst_24 [1] : vector<8x12xf32> to vector<8xf32>
    %33 = vector.shape_cast %32 : vector<8xf32> to vector<8x1xf32>
    %34 = vector.broadcast %33 : vector<8x1xf32> to vector<8x12xf32>
    %35 = arith.subf %31, %34 : vector<8x12xf32>
    %36 = math.exp %35 : vector<8x12xf32>
    %cst_25 = arith.constant dense<0.000000e+00> : vector<8x8xf32>
    %37 = tpu.matmul %36, %19, %cst_25 {dimension_numbers = #tpu.dot_dimension_numbers<[1], [0], [0], [1], [0, 0, 1, 1], [], []>} : vector<8x12xf32>, vector<12x8xf32>, vector<8x8xf32> -> vector<8x8xf32>
    %38 = vector.extract_strided_slice %37 {offsets = [0, 0], sizes = [8, 4], strides = [1, 1]} : vector<8x8xf32> to vector<8x4xf32>
    %39 = vector.extract_strided_slice %37 {offsets = [0, 4], sizes = [8, 4], strides = [1, 1]} : vector<8x8xf32> to vector<8x4xf32>
    %cst_26 = arith.constant 0.000000e+00 : f32
    %40 = vector.broadcast %cst_26 : f32 to vector<8x4xf32>
    %41 = arith.cmpf ogt, %39, %40 : vector<8x4xf32>
    %cst_27 = arith.constant 1.000000e+00 : f32
    %42 = vector.broadcast %cst_27 : f32 to vector<8x4xf32>
    %43 = arith.select %41, %39, %42 : vector<8x4xi1>, vector<8x4xf32>
    %44 = arith.divf %38, %43 : vector<8x4xf32>
    %45 = arith.select %41, %44, %25 : vector<8x4xi1>, vector<8x4xf32>
    %46 = vector.extract_strided_slice %12 {offsets = [0, 8], sizes = [8, 8], strides = [1, 1]} : vector<8x16xf32> to vector<8x8xf32>
    %47 = vector.extract_strided_slice %17 {offsets = [0, 8], sizes = [12, 8], strides = [1, 1]} : vector<12x16xf32> to vector<12x8xf32>
    %48 = tpu.transpose %47, [1, 0] : vector<12x8xf32> -> vector<8x12xf32>
    %cst_28 = arith.constant dense<0.000000e+00> : vector<8x12xf32>
    %49 = tpu.matmul %46, %48, %cst_28 {dimension_numbers = #tpu.dot_dimension_numbers<[1], [0], [0], [1], [0, 0, 1, 1], [], []>} : vector<8x8xf32>, vector<8x12xf32>, vector<8x12xf32> -> vector<8x12xf32>
    %cst_29 = arith.constant 0.353553385 : f32
    %50 = vector.broadcast %cst_29 : f32 to vector<8x12xf32>
    %51 = arith.mulf %49, %50 : vector<8x12xf32>
    %cst_30 = arith.constant dense<0xFF800000> : vector<8xf32>
    %52 = vector.multi_reduction <maximumf>, %51, %cst_30 [1] : vector<8x12xf32> to vector<8xf32>
    %53 = vector.shape_cast %52 : vector<8xf32> to vector<8x1xf32>
    %54 = vector.broadcast %53 : vector<8x1xf32> to vector<8x12xf32>
    %55 = arith.subf %51, %54 : vector<8x12xf32>
    %56 = math.exp %55 : vector<8x12xf32>
    %cst_31 = arith.constant dense<0.000000e+00> : vector<8x8xf32>
    %57 = tpu.matmul %56, %19, %cst_31 {dimension_numbers = #tpu.dot_dimension_numbers<[1], [0], [0], [1], [0, 0, 1, 1], [], []>} : vector<8x12xf32>, vector<12x8xf32>, vector<8x8xf32> -> vector<8x8xf32>
    %58 = vector.extract_strided_slice %57 {offsets = [0, 0], sizes = [8, 4], strides = [1, 1]} : vector<8x8xf32> to vector<8x4xf32>
    %59 = vector.extract_strided_slice %57 {offsets = [0, 4], sizes = [8, 4], strides = [1, 1]} : vector<8x8xf32> to vector<8x4xf32>
    %cst_32 = arith.constant 0.000000e+00 : f32
    %60 = vector.broadcast %cst_32 : f32 to vector<8x4xf32>
    %61 = arith.cmpf ogt, %59, %60 : vector<8x4xf32>
    %cst_33 = arith.constant 1.000000e+00 : f32
    %62 = vector.broadcast %cst_33 : f32 to vector<8x4xf32>
    %63 = arith.select %61, %59, %62 : vector<8x4xi1>, vector<8x4xf32>
    %64 = arith.divf %58, %63 : vector<8x4xf32>
    %65 = arith.select %61, %64, %25 : vector<8x4xi1>, vector<8x4xf32>
    %66 = tpu.concatenate %45, %65 in 1 : vector<8x4xf32>, vector<8x4xf32> -> vector<8x8xf32>
    %c0_34 = arith.constant 0 : index
    %c0_35 = arith.constant 0 : index
    %67 = vector.load %arg9[%c0_34, %c0_35] : memref<8x32xf32, #tpu.memory_space<vmem>>, vector<8x32xf32>
    %cst_36 = arith.constant dense<0.000000e+00> : vector<8x32xf32>
    %68 = tpu.matmul %66, %67, %cst_36 {dimension_numbers = #tpu.dot_dimension_numbers<[1], [0], [0], [1], [0, 0, 1, 1], [], []>} : vector<8x8xf32>, vector<8x32xf32>, vector<8x32xf32> -> vector<8x32xf32>
    %c0_37 = arith.constant 0 : index
    %c0_38 = arith.constant 0 : index
    %69 = vector.load %arg10[%c0_37, %c0_38] : memref<1x32xf32, #tpu.memory_space<vmem>>, vector<1x32xf32>
    %70 = vector.broadcast %69 : vector<1x32xf32> to vector<8x32xf32>
    %71 = arith.addf %68, %70 : vector<8x32xf32>
    %c0_39 = arith.constant 0 : index
    %c0_40 = arith.constant 0 : index
    %c0_41 = arith.constant 0 : index
    %72 = vector.load %arg11[%c0_39, %c0_40, %c0_41] : memref<1x8x32xf32, #tpu.memory_space<vmem>>, vector<1x8x32xf32>
    %73 = vector.shape_cast %72 : vector<1x8x32xf32> to vector<8x32xf32>
    %74 = vector.shape_cast %71 : vector<8x32xf32> to vector<1x8x32xf32>
    tpu.vector_store %arg11[%c0_39, %c0_40, %c0_41], %74 {strides = array<i32>} : memref<1x8x32xf32, #tpu.memory_space<vmem>>, vector<1x8x32xf32>,
    return
  }
  func.func @transform_0(%arg0: i32) -> (i32, i32, i32) {
    %c0_i32 = arith.constant 0 : i32
    %c0_i32_0 = arith.constant 0 : i32
    %c0_i32_1 = arith.constant 0 : i32
    return %arg0, %c0_i32, %c0_i32_0 : i32, i32, i32
  }
  func.func @transform_1(%arg0: i32) -> (i32, i32, i32) {
    %c0_i32 = arith.constant 0 : i32
    %c0_i32_0 = arith.constant 0 : i32
    %c0_i32_1 = arith.constant 0 : i32
    return %arg0, %c0_i32, %c0_i32_0 : i32, i32, i32
  }
  func.func @transform_2(%arg0: i32) -> (i32, i32, i32) {
    %c0_i32 = arith.constant 0 : i32
    %c0_i32_0 = arith.constant 0 : i32
    %c0_i32_1 = arith.constant 0 : i32
    return %arg0, %c0_i32, %c0_i32_0 : i32, i32, i32
  }
  func.func @transform_3(%arg0: i32) -> (i32, i32, i32) {
    %c0_i32 = arith.constant 0 : i32
    %c0_i32_0 = arith.constant 0 : i32
    %c0_i32_1 = arith.constant 0 : i32
    return %arg0, %c0_i32, %c0_i32_0 : i32, i32, i32
  }
  func.func @transform_4(%arg0: i32) -> (i32, i32) {
    %c0_i32 = arith.constant 0 : i32
    %c0_i32_0 = arith.constant 0 : i32
    %c0_i32_1 = arith.constant 0 : i32
    return %c0_i32, %c0_i32_0 : i32, i32
  }
  func.func @transform_5(%arg0: i32) -> (i32, i32) {
    %c0_i32 = arith.constant 0 : i32
    %c0_i32_0 = arith.constant 0 : i32
    %c0_i32_1 = arith.constant 0 : i32
    return %c0_i32, %c0_i32_0 : i32, i32
  }
  func.func @transform_6(%arg0: i32) -> (i32, i32) {
    %c0_i32 = arith.constant 0 : i32
    %c0_i32_0 = arith.constant 0 : i32
    %c0_i32_1 = arith.constant 0 : i32
    return %c0_i32, %c0_i32_0 : i32, i32
  }
  func.func @transform_7(%arg0: i32) -> (i32, i32) {
    %c0_i32 = arith.constant 0 : i32
    %c0_i32_0 = arith.constant 0 : i32
    %c0_i32_1 = arith.constant 0 : i32
    return %c0_i32, %c0_i32_0 : i32, i32
  }
  func.func @transform_8(%arg0: i32) -> (i32, i32) {
    %c0_i32 = arith.constant 0 : i32
    %c0_i32_0 = arith.constant 0 : i32
    %c0_i32_1 = arith.constant 0 : i32
    return %c0_i32, %c0_i32_0 : i32, i32
  }
  func.func @transform_9(%arg0: i32) -> (i32, i32) {
    %c0_i32 = arith.constant 0 : i32
    %c0_i32_0 = arith.constant 0 : i32
    %c0_i32_1 = arith.constant 0 : i32
    return %c0_i32, %c0_i32_0 : i32, i32
  }
  func.func @transform_10(%arg0: i32) -> (i32, i32, i32) {
    %c0_i32 = arith.constant 0 : i32
    %c0_i32_0 = arith.constant 0 : i32
    %c0_i32_1 = arith.constant 0 : i32
    return %arg0, %c0_i32, %c0_i32_0 : i32, i32, i32
  }
}

</mosaic_0001>

<llo_original>
// kernel: tpu_custom_call.1
$region0: #{tpu_custom_call.1}
  #allocation0 [shape = 'u32[]', space=smem, size = 0x4, offset = 0x4, fixed_abs, tag = 'smem constant byte address 0x4 - core index']
  #allocation1 [shape = 'u32[144,128]{1,0:T(1,128)}', space=vmem, size = 0x12000, scoped, tag = 'internal scratch']
  %s0 = inlined_call_operand.vmem [shape: f32[2,8,16], index: 0, kind: input, shape index: {}]
  %s1 = inlined_call_operand.vmem [shape: f32[2,12,16], index: 1, kind: input, shape index: {}]
  %s2 = inlined_call_operand.vmem [shape: f32[2,12,4], index: 2, kind: input, shape index: {}]
  %s3 = inlined_call_operand.vmem [shape: f32[2,12,4], index: 3, kind: input, shape index: {}]
  %s4 = inlined_call_operand.vmem [shape: f32[16,16], index: 4, kind: input, shape index: {}]
  %s5 = inlined_call_operand.vmem [shape: f32[1,16], index: 5, kind: input, shape index: {}]
  %s6 = inlined_call_operand.vmem [shape: f32[16,16], index: 6, kind: input, shape index: {}]
  %s7 = inlined_call_operand.vmem [shape: f32[1,16], index: 7, kind: input, shape index: {}]
  %s8 = inlined_call_operand.vmem [shape: f32[8,32], index: 8, kind: input, shape index: {}]
  %s9 = inlined_call_operand.vmem [shape: f32[1,32], index: 9, kind: input, shape index: {}]
  %s10 = inlined_call_operand.hbm [shape: f32[2,8,32], index: 10, kind: output, shape index: {}]
  %s11 = sld [smem:[#allocation0]]
  $region73: #{tpu_custom_call.1} parent=0
    _
  %s13 = ssub.s32 1, %s11
  %s14 = scalar_select 0, %s13, %s11
  $region1: #{tpu_custom_call.1} parent=0
    #allocation2 [shape = 'u8[8192]{0}', space=vmem, size = 0x2000, scoped, tag = 'output window, operand 0']
    #allocation3 [shape = 's32[2]{0}', space=sflag, size = 0x8, scoped, tag = 'scoped memory for tpu_custom_call.1']
    %15 = vsyncpa [#allocation3], 0
    %s16 = scalar_lea.sflag [#allocation3], 1
    %17 = vsyncpa %s16, 0
    loop: start=0, step=1, limit=4
    $region2: #{tpu_custom_call.1} parent=1 // loop_pre_header
      _
    $region3: #{tpu_custom_call.1} parent=1 // loop_header
      %s19 = sphi 0, %s23
      %p20 = scmp.ge.s32.totalorder %s19, 4
      %s29 = sphi 0, %s31
      %s32 = sphi 0, %s29
      %s33 = sphi 0, %s32
      %s49 = sphi 0, %s33
      %s55 = sphi 0, %s57
      %s58 = sphi 0, %s55
      %s59 = sphi 0, %s58
      %s75 = sphi 0, %s59
      %s81 = sphi 0, %s83
      %s84 = sphi 0, %s81
      %s85 = sphi 0, %s84
      %s101 = sphi 0, %s85
      %s107 = sphi 0, %s109
      %s110 = sphi 0, %s107
      %s111 = sphi 0, %s110
      %s127 = sphi 0, %s111
      %s131 = sphi 0, %s131
      %s133 = sphi 0, %s131
      %s134 = sphi 0, %s133
      %s148 = sphi 0, %s134
      %s152 = sphi 0, %s152
      %s154 = sphi 0, %s152
      %s155 = sphi 0, %s154
      %s169 = sphi 0, %s155
      %s173 = sphi 0, %s173
      %s175 = sphi 0, %s173
      %s176 = sphi 0, %s175
      %s190 = sphi 0, %s176
      %s194 = sphi 0, %s194
      %s196 = sphi 0, %s194
      %s197 = sphi 0, %s196
      %s211 = sphi 0, %s197
      %s215 = sphi 0, %s215
      %s217 = sphi 0, %s215
      %s218 = sphi 0, %s217
      %s232 = sphi 0, %s218
      %s236 = sphi 0, %s236
      %s238 = sphi 0, %s236
      %s239 = sphi 0, %s238
      %s253 = sphi 0, %s239
      %s259 = sphi 0, %s261
      %s262 = sphi 0, %s259
      %s263 = sphi 0, %s262
      %s279 = sphi 0, %s263
    $region4: #{tpu_custom_call.1} parent=1 // loop_header_branch
      %22 = sbr.rel (%p20) target = $region8
    $region5: #{tpu_custom_call.1} parent=1 // loop_body
      %s24 = ssub.s32 %s19, 1
      %s25 = ssub.s32 %s19, 2
      %s26 = sadd.s32 %s19, 1
      %s27 = ssub.s32 %s19, %s26
      %p28 = scmp.eq.s32.totalorder %s27, 0
      %s30 = sadd.s32 %s29, 1
      %s31 = scalar_select %p28, %s29, %s30
      %p34 = pneg %p28
      %p35 = scmp.eq.s32.totalorder %s19, 1
      %p36 = por %p34, %p35
      %p37 = scmp.ne.s32.totalorder %s29, %s32
      %p38 = scmp.eq.s32.totalorder %s19, 0
      %p39 = por %p37, %p38
      %p40 = scmp.ne.s32.totalorder %s29, %s32
      %p41 = scmp.eq.s32.totalorder %s24, 1
      %p42 = por %p40, %p41
      %p43 = scmp.ne.s32.totalorder %s32, %s33
      %p44 = scmp.eq.s32.totalorder %s24, 0
      %p45 = por %p43, %p44
      %p46 = scmp.ne.s32.totalorder %s32, %s33
      %p47 = scmp.eq.s32.totalorder %s25, 1
      %p48 = por %p46, %p47
      %p50 = scmp.ne.s32.totalorder %s33, %s49
      %p51 = scmp.eq.s32.totalorder %s25, 0
      %p52 = por %p50, %p51
      %s53 = ssub.s32 %s19, %s26
      %p54 = scmp.eq.s32.totalorder %s53, 0
      %s56 = sadd.s32 %s55, 1
      %s57 = scalar_select %p54, %s55, %s56
      %p60 = pneg %p54
      %p61 = scmp.eq.s32.totalorder %s19, 1
      %p62 = por %p60, %p61
      %p63 = scmp.ne.s32.totalorder %s55, %s58
      %p64 = scmp.eq.s32.totalorder %s19, 0
      %p65 = por %p63, %p64
      %p66 = scmp.ne.s32.totalorder %s55, %s58
      %p67 = scmp.eq.s32.totalorder %s24, 1
      %p68 = por %p66, %p67
      %p69 = scmp.ne.s32.totalorder %s58, %s59
      %p70 = scmp.eq.s32.totalorder %s24, 0
      %p71 = por %p69, %p70
      %p72 = scmp.ne.s32.totalorder %s58, %s59
      %p73 = scmp.eq.s32.totalorder %s25, 1
      %p74 = por %p72, %p73
      %p76 = scmp.ne.s32.totalorder %s59, %s75
      %p77 = scmp.eq.s32.totalorder %s25, 0
      %p78 = por %p76, %p77
      %s79 = ssub.s32 %s19, %s26
      %p80 = scmp.eq.s32.totalorder %s79, 0
      %s82 = sadd.s32 %s81, 1
      %s83 = scalar_select %p80, %s81, %s82
      %p86 = pneg %p80
      %p87 = scmp.eq.s32.totalorder %s19, 1
      %p88 = por %p86, %p87
      %p89 = scmp.ne.s32.totalorder %s81, %s84
      %p90 = scmp.eq.s32.totalorder %s19, 0
      %p91 = por %p89, %p90
      %p92 = scmp.ne.s32.totalorder %s81, %s84
      %p93 = scmp.eq.s32.totalorder %s24, 1
      %p94 = por %p92, %p93
      %p95 = scmp.ne.s32.totalorder %s84, %s85
      %p96 = scmp.eq.s32.totalorder %s24, 0
      %p97 = por %p95, %p96
      %p98 = scmp.ne.s32.totalorder %s84, %s85
      %p99 = scmp.eq.s32.totalorder %s25, 1
      %p100 = por %p98, %p99
      %p102 = scmp.ne.s32.totalorder %s85, %s101
      %p103 = scmp.eq.s32.totalorder %s25, 0
      %p104 = por %p102, %p103
      %s105 = ssub.s32 %s19, %s26
      %p106 = scmp.eq.s32.totalorder %s105, 0
      %s108 = sadd.s32 %s107, 1
      %s109 = scalar_select %p106, %s107, %s108
      %p112 = pneg %p106
      %p113 = scmp.eq.s32.totalorder %s19, 1
      %p114 = por %p112, %p113
      %p115 = scmp.ne.s32.totalorder %s107, %s110
      %p116 = scmp.eq.s32.totalorder %s19, 0
      %p117 = por %p115, %p116
      %p118 = scmp.ne.s32.totalorder %s107, %s110
      %p119 = scmp.eq.s32.totalorder %s24, 1
      %p120 = por %p118, %p119
      %p121 = scmp.ne.s32.totalorder %s110, %s111
      %p122 = scmp.eq.s32.totalorder %s24, 0
      %p123 = por %p121, %p122
      %p124 = scmp.ne.s32.totalorder %s110, %s111
      %p125 = scmp.eq.s32.totalorder %s25, 1
      %p126 = por %p124, %p125
      %p128 = scmp.ne.s32.totalorder %s111, %s127
      %p129 = scmp.eq.s32.totalorder %s25, 0
      %p130 = por %p128, %p129
      %s132 = sadd.s32 %s131, 1
      %p135 = scmp.eq.s32.totalorder %s19, 1
      %p136 = scmp.ne.s32.totalorder %s131, %s133
      %p137 = scmp.eq.s32.totalorder %s19, 0
      %p138 = por %p136, %p137
      %p139 = scmp.ne.s32.totalorder %s131, %s133
      %p140 = scmp.eq.s32.totalorder %s24, 1
      %p141 = por %p139, %p140
      %p142 = scmp.ne.s32.totalorder %s133, %s134
      %p143 = scmp.eq.s32.totalorder %s24, 0
      %p144 = por %p142, %p143
      %p145 = scmp.ne.s32.totalorder %s133, %s134
      %p146 = scmp.eq.s32.totalorder %s25, 1
      %p147 = por %p145, %p146
      %p149 = scmp.ne.s32.totalorder %s134, %s148
      %p150 = scmp.eq.s32.totalorder %s25, 0
      %p151 = por %p149, %p150
      %s153 = sadd.s32 %s152, 1
      %p156 = scmp.eq.s32.totalorder %s19, 1
      %p157 = scmp.ne.s32.totalorder %s152, %s154
      %p158 = scmp.eq.s32.totalorder %s19, 0
      %p159 = por %p157, %p158
      %p160 = scmp.ne.s32.totalorder %s152, %s154
      %p161 = scmp.eq.s32.totalorder %s24, 1
      %p162 = por %p160, %p161
      %p163 = scmp.ne.s32.totalorder %s154, %s155
      %p164 = scmp.eq.s32.totalorder %s24, 0
      %p165 = por %p163, %p164
      %p166 = scmp.ne.s32.totalorder %s154, %s155
      %p167 = scmp.eq.s32.totalorder %s25, 1
      %p168 = por %p166, %p167
      %p170 = scmp.ne.s32.totalorder %s155, %s169
      %p171 = scmp.eq.s32.totalorder %s25, 0
      %p172 = por %p170, %p171
      %s174 = sadd.s32 %s173, 1
      %p177 = scmp.eq.s32.totalorder %s19, 1
      %p178 = scmp.ne.s32.totalorder %s173, %s175
      %p179 = scmp.eq.s32.totalorder %s19, 0
      %p180 = por %p178, %p179
      %p181 = scmp.ne.s32.totalorder %s173, %s175
      %p182 = scmp.eq.s32.totalorder %s24, 1
      %p183 = por %p181, %p182
      %p184 = scmp.ne.s32.totalorder %s175, %s176
      %p185 = scmp.eq.s32.totalorder %s24, 0
      %p186 = por %p184, %p185
      %p187 = scmp.ne.s32.totalorder %s175, %s176
      %p188 = scmp.eq.s32.totalorder %s25, 1
      %p189 = por %p187, %p188
      %p191 = scmp.ne.s32.totalorder %s176, %s190
      %p192 = scmp.eq.s32.totalorder %s25, 0
      %p193 = por %p191, %p192
      %s195 = sadd.s32 %s194, 1
      %p198 = scmp.eq.s32.totalorder %s19, 1
      %p199 = scmp.ne.s32.totalorder %s194, %s196
      %p200 = scmp.eq.s32.totalorder %s19, 0
      %p201 = por %p199, %p200
      %p202 = scmp.ne.s32.totalorder %s194, %s196
      %p203 = scmp.eq.s32.totalorder %s24, 1
      %p204 = por %p202, %p203
      %p205 = scmp.ne.s32.totalorder %s196, %s197
      %p206 = scmp.eq.s32.totalorder %s24, 0
      %p207 = por %p205, %p206
      %p208 = scmp.ne.s32.totalorder %s196, %s197
      %p209 = scmp.eq.s32.totalorder %s25, 1
      %p210 = por %p208, %p209
      %p212 = scmp.ne.s32.totalorder %s197, %s211
      %p213 = scmp.eq.s32.totalorder %s25, 0
      %p214 = por %p212, %p213
      %s216 = sadd.s32 %s215, 1
      %p219 = scmp.eq.s32.totalorder %s19, 1
      %p220 = scmp.ne.s32.totalorder %s215, %s217
      %p221 = scmp.eq.s32.totalorder %s19, 0
      %p222 = por %p220, %p221
      %p223 = scmp.ne.s32.totalorder %s215, %s217
      %p224 = scmp.eq.s32.totalorder %s24, 1
      %p225 = por %p223, %p224
      %p226 = scmp.ne.s32.totalorder %s217, %s218
      %p227 = scmp.eq.s32.totalorder %s24, 0
      %p228 = por %p226, %p227
      %p229 = scmp.ne.s32.totalorder %s217, %s218
      %p230 = scmp.eq.s32.totalorder %s25, 1
      %p231 = por %p229, %p230
      %p233 = scmp.ne.s32.totalorder %s218, %s232
      %p234 = scmp.eq.s32.totalorder %s25, 0
      %p235 = por %p233, %p234
      %s237 = sadd.s32 %s236, 1
      %p240 = scmp.eq.s32.totalorder %s19, 1
      %p241 = scmp.ne.s32.totalorder %s236, %s238
      %p242 = scmp.eq.s32.totalorder %s19, 0
      %p243 = por %p241, %p242
      %p244 = scmp.ne.s32.totalorder %s236, %s238
      %p245 = scmp.eq.s32.totalorder %s24, 1
      %p246 = por %p244, %p245
      %p247 = scmp.ne.s32.totalorder %s238, %s239
      %p248 = scmp.eq.s32.totalorder %s24, 0
      %p249 = por %p247, %p248
      %p250 = scmp.ne.s32.totalorder %s238, %s239
      %p251 = scmp.eq.s32.totalorder %s25, 1
      %p252 = por %p250, %p251
      %p254 = scmp.ne.s32.totalorder %s239, %s253
      %p255 = scmp.eq.s32.totalorder %s25, 0
      %p256 = por %p254, %p255
      %s257 = ssub.s32 %s19, %s26
      %p258 = scmp.eq.s32.totalorder %s257, 0
      %s260 = sadd.s32 %s259, 1
      %s261 = scalar_select %p258, %s259, %s260
      %p264 = pneg %p258
      %p265 = scmp.eq.s32.totalorder %s19, 1
      %p266 = por %p264, %p265
      %p267 = scmp.ne.s32.totalorder %s259, %s262
      %p268 = scmp.eq.s32.totalorder %s19, 0
      %p269 = por %p267, %p268
      %p270 = scmp.ne.s32.totalorder %s259, %s262
      %p271 = scmp.eq.s32.totalorder %s24, 1
      %p272 = por %p270, %p271
      %p273 = scmp.ne.s32.totalorder %s262, %s263
      %p274 = scmp.eq.s32.totalorder %s24, 0
      %p275 = por %p273, %p274
      %p276 = scmp.ne.s32.totalorder %s262, %s263
      %p277 = scmp.eq.s32.totalorder %s25, 1
      %p278 = por %p276, %p277
      %p280 = scmp.ne.s32.totalorder %s263, %s279
      %p281 = scmp.eq.s32.totalorder %s25, 0
      %p282 = por %p280, %p281
      %p283 = scmp.le.s32.totalorder 1, %s19
      %p284 = scmp.lt.s32.totalorder %s19, 3
      %p285 = pnand %p283, %p284
      %p286 = pneg %p285
      // Predicated region
      $region9: #{tpu_custom_call.1} parent=5 // pred_check
        _
      $region10: #{tpu_custom_call.1} parent=5 // pred_check_branch
        %288 = sbr.rel (%p285) target = $region12
      $region11: #{tpu_custom_call.1} parent=5 // pred_region
        %s289 = ssub.s32 %s19, 1
        // Predicated region
        $region13: #{tpu_custom_call.1} parent=11 // pred_check
          %p290 = pneg %p144
        $region14: #{tpu_custom_call.1} parent=11 // pred_check_branch
          %292 = sbr.rel (%p290) target = $region16
        $region15: #{tpu_custom_call.1} parent=11 // pred_region
          _
        $region16: #{tpu_custom_call.1} parent=11 // pred_fallthru
          _
        // Predicated region
        $region17: #{tpu_custom_call.1} parent=11 // pred_check
          %p293 = pneg %p165
        $region18: #{tpu_custom_call.1} parent=11 // pred_check_branch
          %295 = sbr.rel (%p293) target = $region20
        $region19: #{tpu_custom_call.1} parent=11 // pred_region
          _
        $region20: #{tpu_custom_call.1} parent=11 // pred_fallthru
          _
        // Predicated region
        $region21: #{tpu_custom_call.1} parent=11 // pred_check
          %p296 = pneg %p186
        $region22: #{tpu_custom_call.1} parent=11 // pred_check_branch
          %298 = sbr.rel (%p296) target = $region24
        $region23: #{tpu_custom_call.1} parent=11 // pred_region
          _
        $region24: #{tpu_custom_call.1} parent=11 // pred_fallthru
          _
        // Predicated region
        $region25: #{tpu_custom_call.1} parent=11 // pred_check
          %p299 = pneg %p207
        $region26: #{tpu_custom_call.1} parent=11 // pred_check_branch
          %301 = sbr.rel (%p299) target = $region28
        $region27: #{tpu_custom_call.1} parent=11 // pred_region
          _
        $region28: #{tpu_custom_call.1} parent=11 // pred_fallthru
          _
        // Predicated region
        $region29: #{tpu_custom_call.1} parent=11 // pred_check
          %p302 = pneg %p228
        $region30: #{tpu_custom_call.1} parent=11 // pred_check_branch
          %304 = sbr.rel (%p302) target = $region32
        $region31: #{tpu_custom_call.1} parent=11 // pred_region
          _
        $region32: #{tpu_custom_call.1} parent=11 // pred_fallthru
          _
        // Predicated region
        $region33: #{tpu_custom_call.1} parent=11 // pred_check
          %p305 = pneg %p249
        $region34: #{tpu_custom_call.1} parent=11 // pred_check_branch
          %307 = sbr.rel (%p305) target = $region36
        $region35: #{tpu_custom_call.1} parent=11 // pred_region
          _
        $region36: #{tpu_custom_call.1} parent=11 // pred_fallthru
          _
      $region12: #{tpu_custom_call.1} parent=5 // pred_fallthru
        _
      %p308 = scmp.lt.s32.totalorder %s19, 2
      // Predicated region
      $region37: #{tpu_custom_call.1} parent=5 // pred_check
        %p309 = pneg %p308
      $region38: #{tpu_custom_call.1} parent=5 // pred_check_branch
        %311 = sbr.rel (%p309) target = $region40
      $region39: #{tpu_custom_call.1} parent=5 // pred_region
        // Predicated region
        $region41: #{tpu_custom_call.1} parent=39 // pred_check
          %p312 = pneg %p39
        $region42: #{tpu_custom_call.1} parent=39 // pred_check_branch
          %314 = sbr.rel (%p312) target = $region44
        $region43: #{tpu_custom_call.1} parent=39 // pred_region
          %p315 = scmp.lt.s32.totalorder %s19, 1
          %s316 = scalar_select %p315, %s19, 1
          %s317 = smul.addr %s316, 8
          %s318 = scalar_lea.vmem %s0, %s317
        $region44: #{tpu_custom_call.1} parent=39 // pred_fallthru
          _
        // Predicated region
        $region45: #{tpu_custom_call.1} parent=39 // pred_check
          %p319 = pneg %p65
        $region46: #{tpu_custom_call.1} parent=39 // pred_check_branch
          %321 = sbr.rel (%p319) target = $region48
        $region47: #{tpu_custom_call.1} parent=39 // pred_region
          %p322 = scmp.lt.s32.totalorder %s19, 1
          %s323 = scalar_select %p322, %s19, 1
          %s324 = smul.addr %s323, 2
          %s325 = smul.addr %s324, 8
          %s326 = scalar_lea.vmem %s1, %s325
        $region48: #{tpu_custom_call.1} parent=39 // pred_fallthru
          _
        // Predicated region
        $region49: #{tpu_custom_call.1} parent=39 // pred_check
          %p327 = pneg %p91
        $region50: #{tpu_custom_call.1} parent=39 // pred_check_branch
          %329 = sbr.rel (%p327) target = $region52
        $region51: #{tpu_custom_call.1} parent=39 // pred_region
          %p330 = scmp.lt.s32.totalorder %s19, 1
          %s331 = scalar_select %p330, %s19, 1
          %s332 = smul.addr %s331, 2
          %s333 = smul.addr %s332, 8
          %s334 = scalar_lea.vmem %s2, %s333
        $region52: #{tpu_custom_call.1} parent=39 // pred_fallthru
          _
        // Predicated region
        $region53: #{tpu_custom_call.1} parent=39 // pred_check
          %p335 = pneg %p117
        $region54: #{tpu_custom_call.1} parent=39 // pred_check_branch
          %337 = sbr.rel (%p335) target = $region56
        $region55: #{tpu_custom_call.1} parent=39 // pred_region
          %p338 = scmp.lt.s32.totalorder %s19, 1
          %s339 = scalar_select %p338, %s19, 1
          %s340 = smul.addr %s339, 2
          %s341 = smul.addr %s340, 8
          %s342 = scalar_lea.vmem %s3, %s341
        $region56: #{tpu_custom_call.1} parent=39 // pred_fallthru
          _
      $region40: #{tpu_custom_call.1} parent=5 // pred_fallthru
        _
      %p343 = scmp.le.s32.totalorder 1, %s19
      %p344 = scmp.lt.s32.totalorder %s19, 3
      %p345 = pnand %p343, %p344
      %p346 = pneg %p345
      // Predicated region
      $region57: #{tpu_custom_call.1} parent=5 // pred_check
        _
      $region58: #{tpu_custom_call.1} parent=5 // pred_check_branch
        %348 = sbr.rel (%p345) target = $region60
      $region59: #{tpu_custom_call.1} parent=5 // pred_region
        %s349 = ssub.s32 %s19, 1
        %p350 = scmp.lt.s32.totalorder %s24, 1
        %s351 = scalar_select %p350, %s24, 1
        %s352 = smul.addr %s351, 8
        %s353 = scalar_lea.vmem %s0, %s352
        %p354 = pneg %p45
        %p355 = pneg %p42
        %p356 = scmp.lt.s32.totalorder %s24, 1
        %s357 = scalar_select %p356, %s24, 1
        %s358 = smul.addr %s357, 2
        %s359 = smul.addr %s358, 8
        %s360 = scalar_lea.vmem %s1, %s359
        %p361 = pneg %p71
        %p362 = pneg %p68
        %p363 = scmp.lt.s32.totalorder %s24, 1
        %s364 = scalar_select %p363, %s24, 1
        %s365 = smul.addr %s364, 2
        %s366 = smul.addr %s365, 8
        %s367 = scalar_lea.vmem %s2, %s366
        %p368 = pneg %p97
        %p369 = pneg %p94
        %p370 = scmp.lt.s32.totalorder %s24, 1
        %s371 = scalar_select %p370, %s24, 1
        %s372 = smul.addr %s371, 2
        %s373 = smul.addr %s372, 8
        %s374 = scalar_lea.vmem %s3, %s373
        %p375 = pneg %p123
        %p376 = pneg %p120
        %p377 = pneg %p144
        %p378 = pneg %p141
        %p379 = pneg %p165
        %p380 = pneg %p162
        %p381 = pneg %p186
        %p382 = pneg %p183
        %p383 = pneg %p207
        %p384 = pneg %p204
        %p385 = pneg %p228
        %p386 = pneg %p225
        %p387 = pneg %p249
        %p388 = pneg %p246
        %p389 = pneg %p275
        %p390 = pneg %p272
        %s391 = sand.u32 %s262, 1
        %s392 = scalar_lea.sflag [#allocation3], %s391
        %s393 = sand.u32 %s262, 1
        %s394 = smul.addr %s393, 8
        %s395 = scalar_lea.vmem [#allocation2], %s394
        %p396 = scmp.lt.s32.totalorder %s24, 1
        %s397 = scalar_select %p396, %s24, 1
        %s398 = smul.addr %s397, 8
        %s399 = scalar_lea.vmem %s0, %s398
        %p400 = scmp.lt.s32.totalorder %s24, 1
        %s401 = scalar_select %p400, %s24, 1
        %s402 = smul.addr %s401, 2
        %s403 = smul.addr %s402, 8
        %s404 = scalar_lea.vmem %s1, %s403
        %p405 = scmp.lt.s32.totalorder %s24, 1
        %s406 = scalar_select %p405, %s24, 1
        %s407 = smul.addr %s406, 2
        %s408 = smul.addr %s407, 8
        %s409 = scalar_lea.vmem %s2, %s408
        %p410 = scmp.lt.s32.totalorder %s24, 1
        %s411 = scalar_select %p410, %s24, 1
        %s412 = smul.addr %s411, 2
        %s413 = smul.addr %s412, 8
        %s414 = scalar_lea.vmem %s3, %s413
        %v415 = vld [vmem:[%s399] sm:$0xff]
        %v416 = vld [vmem:[%s404] sm:$0xff]
        %v417 = vld [vmem:[%s404 + $0x8] sm:$0xf]
        %v418 = vld [vmem:[%s409] sm:$0xff]
        %v419 = vld [vmem:[%s409 + $0x8] sm:$0xf]
        %v420 = vld [vmem:[%s414] sm:$0xff]
        %v421 = vld [vmem:[%s414 + $0x8] sm:$0xf]
        %v422 = vld [vmem:[%s4] sm:$0xff]
        %v423 = vld [vmem:[%s4 + $0x8] sm:$0xff]
        %v424 = vld [vmem:[%s5] sm:$0x1]
        %v426 = vlaneseq
        %v427 = vshrl.u32 %v426, 7
        %v428 = vsub.s32 0, %v427
        %v429 = vrot.slane %v424, %v428
        %vm431 = vcmask 130048
        %v433 = vsel %vm431, %v415, 0
        %435 = vmatprep.subr.mxu0 0.0
        %436 = vmatpush1.msra.mxu0 %v422
        %437 = vmatprep.subr.mxu0 0.0
        %438 = vmatpush1.msra.mxu0 %v423
        %439 = vmatprep.subr.mxu0 0.0
        %440 = vmatpush1.msra.mxu0 0.0
        %441 = vmatprep.subr.mxu0 0.0
        %442 = vmatpush1.msra.mxu0 0.0
        %443 = vmatprep.subr.mxu0 0.0
        %444 = vmatpush1.msra.mxu0 0.0
        %445 = vmatprep.subr.mxu0 0.0
        %446 = vmatpush1.msra.mxu0 0.0
        %447 = vmatprep.subr.mxu0 0.0
        %448 = vmatpush1.msra.mxu0 0.0
        %449 = vmatprep.subr.mxu0 0.0
        %450 = vmatpush1.msra.mxu0 0.0
        %451 = vmatprep.subr.mxu0 0.0
        %452 = vmatpush1.msra.mxu0 0.0
        %453 = vmatprep.subr.mxu0 0.0
        %454 = vmatpush1.msra.mxu0 0.0
        %455 = vmatprep.subr.mxu0 0.0
        %456 = vmatpush1.msra.mxu0 0.0
        %457 = vmatprep.subr.mxu0 0.0
        %458 = vmatpush1.msra.mxu0 0.0
        %459 = vmatprep.subr.mxu0 0.0
        %460 = vmatpush1.msra.mxu0 0.0
        %461 = vmatprep.subr.mxu0 0.0
        %462 = vmatpush1.msra.mxu0 0.0
        %463 = vmatprep.subr.mxu0 0.0
        %464 = vmatpush1.msra.mxu0 0.0
        %465 = vmatprep.subr.mxu0 0.0
        %466 = vmatpush1.msra.mxu0 0.0
        %467 = vmatprep.subr.mxu0 0.0
        %468 = vmatpush1.msra.mxu0 0.0
        %469 = vmatprep.subr.mxu0 0.0
        %470 = vmatpush1.msra.mxu0 0.0
        %471 = vmatprep.subr.mxu0 0.0
        %472 = vmatpush1.msra.mxu0 0.0
        %473 = vmatprep.subr.mxu0 0.0
        %474 = vmatpush1.msra.mxu0 0.0
        %475 = vmatprep.subr.mxu0 0.0
        %476 = vmatpush1.msra.mxu0 0.0
        %477 = vmatprep.subr.mxu0 0.0
        %478 = vmatpush1.msra.mxu0 0.0
        %479 = vmatprep.subr.mxu0 0.0
        %480 = vmatpush1.msra.mxu0 0.0
        %481 = vmatprep.subr.mxu0 0.0
        %482 = vmatpush1.msra.mxu0 0.0
        %483 = vmatprep.subr.mxu0 0.0
        %484 = vmatpush1.msra.mxu0 0.0
        %485 = vmatprep.subr.mxu0 0.0
        %486 = vmatpush1.msra.mxu0 0.0
        %487 = vmatprep.subr.mxu0 0.0
        %488 = vmatpush1.msra.mxu0 0.0
        %489 = vmatprep.subr.mxu0 0.0
        %490 = vmatpush1.msra.mxu0 0.0
        %491 = vmatprep.subr.mxu0 0.0
        %492 = vmatpush1.msra.mxu0 0.0
        %493 = vmatprep.subr.mxu0 0.0
        %494 = vmatpush1.msra.mxu0 0.0
        %495 = vmatprep.subr.mxu0 0.0
        %496 = vmatpush1.msra.mxu0 0.0
        %497 = vmatprep.subr.mxu0 0.0
        %498 = vmatpush1.msra.mxu0 0.0
        %499 = vmatprep.mubr.f32.mxu0 0.0
        %500 = vmatmul.mubr.f32.gmra.mrb[0].mxu0 %v433
        %v501 = vpop.f32.mrb[0].mxu0
        %v502 = vadd.f32 %v429, %v501
        %v503 = vpop.f32.mrb[0].mxu0
        %504 = vdwg.mxu0
        %v505 = vld [vmem:[%s6] sm:$0xff]
        %v506 = vld [vmem:[%s6 + $0x8] sm:$0xff]
        %v507 = vld [vmem:[%s7] sm:$0x1]
        %v509 = vlaneseq
        %v510 = vshrl.u32 %v509, 7
        %v511 = vsub.s32 0, %v510
        %v512 = vrot.slane %v507, %v511
        %v515 = vsel %vm431, %v416, 0
        %v518 = vsel %vm431, %v417, 0
        %520 = vmatprep.subr.mxu0 0.0
        %521 = vmatpush1.msra.mxu0 %v505
        %522 = vmatprep.subr.mxu0 0.0
        %523 = vmatpush1.msra.mxu0 %v506
        %524 = vmatprep.subr.mxu0 0.0
        %525 = vmatpush1.msra.mxu0 0.0
        %526 = vmatprep.subr.mxu0 0.0
        %527 = vmatpush1.msra.mxu0 0.0
        %528 = vmatprep.subr.mxu0 0.0
        %529 = vmatpush1.msra.mxu0 0.0
        %530 = vmatprep.subr.mxu0 0.0
        %531 = vmatpush1.msra.mxu0 0.0
        %532 = vmatprep.subr.mxu0 0.0
        %533 = vmatpush1.msra.mxu0 0.0
        %534 = vmatprep.subr.mxu0 0.0
        %535 = vmatpush1.msra.mxu0 0.0
        %536 = vmatprep.subr.mxu0 0.0
        %537 = vmatpush1.msra.mxu0 0.0
        %538 = vmatprep.subr.mxu0 0.0
        %539 = vmatpush1.msra.mxu0 0.0
        %540 = vmatprep.subr.mxu0 0.0
        %541 = vmatpush1.msra.mxu0 0.0
        %542 = vmatprep.subr.mxu0 0.0
        %543 = vmatpush1.msra.mxu0 0.0
        %544 = vmatprep.subr.mxu0 0.0
        %545 = vmatpush1.msra.mxu0 0.0
        %546 = vmatprep.subr.mxu0 0.0
        %547 = vmatpush1.msra.mxu0 0.0
        %548 = vmatprep.subr.mxu0 0.0
        %549 = vmatpush1.msra.mxu0 0.0
        %550 = vmatprep.subr.mxu0 0.0
        %551 = vmatpush1.msra.mxu0 0.0
        %552 = vmatprep.subr.mxu0 0.0
        %553 = vmatpush1.msra.mxu0 0.0
        %554 = vmatprep.subr.mxu0 0.0
        %555 = vmatpush1.msra.mxu0 0.0
        %556 = vmatprep.subr.mxu0 0.0
        %557 = vmatpush1.msra.mxu0 0.0
        %558 = vmatprep.subr.mxu0 0.0
        %559 = vmatpush1.msra.mxu0 0.0
        %560 = vmatprep.subr.mxu0 0.0
        %561 = vmatpush1.msra.mxu0 0.0
        %562 = vmatprep.subr.mxu0 0.0
        %563 = vmatpush1.msra.mxu0 0.0
        %564 = vmatprep.subr.mxu0 0.0
        %565 = vmatpush1.msra.mxu0 0.0
        %566 = vmatprep.subr.mxu0 0.0
        %567 = vmatpush1.msra.mxu0 0.0
        %568 = vmatprep.subr.mxu0 0.0
        %569 = vmatpush1.msra.mxu0 0.0
        %570 = vmatprep.subr.mxu0 0.0
        %571 = vmatpush1.msra.mxu0 0.0
        %572 = vmatprep.subr.mxu0 0.0
        %573 = vmatpush1.msra.mxu0 0.0
        %574 = vmatprep.subr.mxu0 0.0
        %575 = vmatpush1.msra.mxu0 0.0
        %576 = vmatprep.subr.mxu0 0.0
        %577 = vmatpush1.msra.mxu0 0.0
        %578 = vmatprep.subr.mxu0 0.0
        %579 = vmatpush1.msra.mxu0 0.0
        %580 = vmatprep.subr.mxu0 0.0
        %581 = vmatpush1.msra.mxu0 0.0
        %582 = vmatprep.subr.mxu0 0.0
        %583 = vmatpush1.msra.mxu0 0.0
        %584 = vmatprep.mubr.f32.mxu0 0.0
        %585 = vmatmul.mubr.f32.gmra.mrb[0].mxu0 %v515
        %v586 = vpop.f32.mrb[0].mxu0
        %v587 = vadd.f32 %v512, %v586
        %v588 = vpop.f32.mrb[0].mxu0
        %589 = vmatprep.mubr.f32.mxu0 0.0
        %590 = vmatmul.mubr.f32.gmra.mrb[0].mxu0 %v518
        %v591 = vpop.f32.mrb[0].mxu0
        %v592 = vadd.f32 %v512, %v591
        %v593 = vpop.f32.mrb[0].mxu0
        %594 = vdwg.mxu0
        %v595 = vmul.f32 %v420, %v418
        %v596 = vmul.f32 %v421, %v419
        %599 = vrot.lane.b32.xlu0 %v420, 4
        %v600 = vpop.permute.xlu0 %599
        %601 = vrot.lane.b32.xlu0 %v421, 4
        %v602 = vpop.permute.xlu0 %601
        %vm605 = vcmask 31744
        %v606 = vsel %vm605, %v595, %v600
        %v607 = vsel %vm605, %v596, %v602
        %v608 = vsel %vm605, %v418, 0.0
        %vm609 = vcmask 27648
        %v610 = vsel %vm609, %v419, 0.0
        %v611 = vadd.f32 %v608, %v610
        %v612 = vrot.slane %v611, 4
        %v613 = vadd.f32 %v611, %v612
        %v614 = vrot.slane %v613, 2
        %v615 = vadd.f32 %v613, %v614
        %v616 = vrot.slane %v615, 1
        %v617 = vadd.f32 %v615, %v616
        %v618 = vmul.f32 %v617, 0.083333336
        %vm619 = vcmask 64512
        %v621 = vsel %vm619, %v502, 0
        %v624 = vsel %vm619, %v587, 0
        %v627 = vsel %vm619, %v592, 0
        %629 = vmatprep.subr.mxu0 0.0
        %630 = vmatpush1.xpose.msra.mxu0 %v624
        %631 = vmatprep.subr.mxu0 0.0
        %632 = vmatpush1.xpose.msra.mxu0 %v627
        %633 = vmatprep.subr.mxu0 0.0
        %634 = vmatpush1.xpose.msra.mxu0 0.0
        %635 = vmatprep.subr.mxu0 0.0
        %636 = vmatpush1.xpose.msra.mxu0 0.0
        %637 = vmatprep.subr.mxu0 0.0
        %638 = vmatpush1.xpose.msra.mxu0 0.0
        %639 = vmatprep.subr.mxu0 0.0
        %640 = vmatpush1.xpose.msra.mxu0 0.0
        %641 = vmatprep.subr.mxu0 0.0
        %642 = vmatpush1.xpose.msra.mxu0 0.0
        %643 = vmatprep.subr.mxu0 0.0
        %644 = vmatpush1.xpose.msra.mxu0 0.0
        %645 = vmatprep.subr.mxu0 0.0
        %646 = vmatpush1.xpose.msra.mxu0 0.0
        %647 = vmatprep.subr.mxu0 0.0
        %648 = vmatpush1.xpose.msra.mxu0 0.0
        %649 = vmatprep.subr.mxu0 0.0
        %650 = vmatpush1.xpose.msra.mxu0 0.0
        %651 = vmatprep.subr.mxu0 0.0
        %652 = vmatpush1.xpose.msra.mxu0 0.0
        %653 = vmatprep.subr.mxu0 0.0
        %654 = vmatpush1.xpose.msra.mxu0 0.0
        %655 = vmatprep.subr.mxu0 0.0
        %656 = vmatpush1.xpose.msra.mxu0 0.0
        %657 = vmatprep.subr.mxu0 0.0
        %658 = vmatpush1.xpose.msra.mxu0 0.0
        %659 = vmatprep.subr.mxu0 0.0
        %660 = vmatpush1.xpose.msra.mxu0 0.0
        %661 = vmatprep.subr.mxu0 0.0
        %662 = vmatpush1.xpose.msra.mxu0 0.0
        %663 = vmatprep.subr.mxu0 0.0
        %664 = vmatpush1.xpose.msra.mxu0 0.0
        %665 = vmatprep.subr.mxu0 0.0
        %666 = vmatpush1.xpose.msra.mxu0 0.0
        %667 = vmatprep.subr.mxu0 0.0
        %668 = vmatpush1.xpose.msra.mxu0 0.0
        %669 = vmatprep.subr.mxu0 0.0
        %670 = vmatpush1.xpose.msra.mxu0 0.0
        %671 = vmatprep.subr.mxu0 0.0
        %672 = vmatpush1.xpose.msra.mxu0 0.0
        %673 = vmatprep.subr.mxu0 0.0
        %674 = vmatpush1.xpose.msra.mxu0 0.0
        %675 = vmatprep.subr.mxu0 0.0
        %676 = vmatpush1.xpose.msra.mxu0 0.0
        %677 = vmatprep.subr.mxu0 0.0
        %678 = vmatpush1.xpose.msra.mxu0 0.0
        %679 = vmatprep.subr.mxu0 0.0
        %680 = vmatpush1.xpose.msra.mxu0 0.0
        %681 = vmatprep.subr.mxu0 0.0
        %682 = vmatpush1.xpose.msra.mxu0 0.0
        %683 = vmatprep.subr.mxu0 0.0
        %684 = vmatpush1.xpose.msra.mxu0 0.0
        %685 = vmatprep.subr.mxu0 0.0
        %686 = vmatpush1.xpose.msra.mxu0 0.0
        %687 = vmatprep.subr.mxu0 0.0
        %688 = vmatpush1.xpose.msra.mxu0 0.0
        %689 = vmatprep.subr.mxu0 0.0
        %690 = vmatpush1.xpose.msra.mxu0 0.0
        %691 = vmatprep.subr.mxu0 0.0
        %692 = vmatpush1.xpose.msra.mxu0 0.0
        %693 = vmatprep.mubr.f32.mxu0 0.0
        %694 = vmatmul.mubr.f32.gmra.mrb[0].mxu0 %v621
        %v695 = vpop.f32.mrb[0].mxu0
        %v696 = vadd.f32 0.0, %v695
        %v697 = vpop.f32.mrb[0].mxu0
        %698 = vdwg.mxu0
        %v699 = vmul.f32 %v696, 0.35355338
        %vm700 = vcmask 97280
        %v701 = vsel %vm700, %v699, -inf
        %702 = vmax.xlane.f32.xlu0 %v701
        %v703 = vpop.xlane.xlu0 %702
        %v704 = vsub.f32 %v699, %v703
        %v705 = vmul.f32 %v704, 1.442695
        %v706 = vpow.pop %v705
        %v708 = vsel %vm700, %v706, 0
        %vm710 = vcmask 1043456
        %v712 = vsel %vm710, %v607, 0
        %714 = vmatprep.subr.mxu0 0.0
        %715 = vmatpush1.msra.mxu0 %v606
        %716 = vmatprep.subr.mxu0 0.0
        %717 = vmatpush1.msra.mxu0 %v712
        %718 = vmatprep.subr.mxu0 0.0
        %719 = vmatpush1.msra.mxu0 0.0
        %720 = vmatprep.subr.mxu0 0.0
        %721 = vmatpush1.msra.mxu0 0.0
        %722 = vmatprep.subr.mxu0 0.0
        %723 = vmatpush1.msra.mxu0 0.0
        %724 = vmatprep.subr.mxu0 0.0
        %725 = vmatpush1.msra.mxu0 0.0
        %726 = vmatprep.subr.mxu0 0.0
        %727 = vmatpush1.msra.mxu0 0.0
        %728 = vmatprep.subr.mxu0 0.0
        %729 = vmatpush1.msra.mxu0 0.0
        %730 = vmatprep.subr.mxu0 0.0
        %731 = vmatpush1.msra.mxu0 0.0
        %732 = vmatprep.subr.mxu0 0.0
        %733 = vmatpush1.msra.mxu0 0.0
        %734 = vmatprep.subr.mxu0 0.0
        %735 = vmatpush1.msra.mxu0 0.0
        %736 = vmatprep.subr.mxu0 0.0
        %737 = vmatpush1.msra.mxu0 0.0
        %738 = vmatprep.subr.mxu0 0.0
        %739 = vmatpush1.msra.mxu0 0.0
        %740 = vmatprep.subr.mxu0 0.0
        %741 = vmatpush1.msra.mxu0 0.0
        %742 = vmatprep.subr.mxu0 0.0
        %743 = vmatpush1.msra.mxu0 0.0
        %744 = vmatprep.subr.mxu0 0.0
        %745 = vmatpush1.msra.mxu0 0.0
        %746 = vmatprep.subr.mxu0 0.0
        %747 = vmatpush1.msra.mxu0 0.0
        %748 = vmatprep.subr.mxu0 0.0
        %749 = vmatpush1.msra.mxu0 0.0
        %750 = vmatprep.subr.mxu0 0.0
        %751 = vmatpush1.msra.mxu0 0.0
        %752 = vmatprep.subr.mxu0 0.0
        %753 = vmatpush1.msra.mxu0 0.0
        %754 = vmatprep.subr.mxu0 0.0
        %755 = vmatpush1.msra.mxu0 0.0
        %756 = vmatprep.subr.mxu0 0.0
        %757 = vmatpush1.msra.mxu0 0.0
        %758 = vmatprep.subr.mxu0 0.0
        %759 = vmatpush1.msra.mxu0 0.0
        %760 = vmatprep.subr.mxu0 0.0
        %761 = vmatpush1.msra.mxu0 0.0
        %762 = vmatprep.subr.mxu0 0.0
        %763 = vmatpush1.msra.mxu0 0.0
        %764 = vmatprep.subr.mxu0 0.0
        %765 = vmatpush1.msra.mxu0 0.0
        %766 = vmatprep.subr.mxu0 0.0
        %767 = vmatpush1.msra.mxu0 0.0
        %768 = vmatprep.subr.mxu0 0.0
        %769 = vmatpush1.msra.mxu0 0.0
        %770 = vmatprep.subr.mxu0 0.0
        %771 = vmatpush1.msra.mxu0 0.0
        %772 = vmatprep.subr.mxu0 0.0
        %773 = vmatpush1.msra.mxu0 0.0
        %774 = vmatprep.subr.mxu0 0.0
        %775 = vmatpush1.msra.mxu0 0.0
        %776 = vmatprep.subr.mxu0 0.0
        %777 = vmatpush1.msra.mxu0 0.0
        %778 = vmatprep.mubr.f32.mxu0 0.0
        %779 = vmatmul.mubr.f32.gmra.mrb[0].mxu0 %v708
        %v780 = vpop.f32.mrb[0].mxu0
        %v781 = vadd.f32 0.0, %v780
        %v782 = vpop.f32.mrb[0].mxu0
        %783 = vdwg.mxu0
        %vm784 = vcmp.gt.f32.partialorder %v781, 0.0
        %v785 = vsel %vm784, %v781, 1.0
        %787 = vrot.lane.b32.xlu0 %v785, 124
        %v788 = vpop.permute.xlu0 %787
        %v790 = vrcp.pop %v788
        %v791 = vmul.f32 %v781, %v790
        %793 = vrot.lane.b32.xlu0 %v791, 4
        %v794 = vpop.permute.xlu0 %793
        %797 = vrot.lane.b32.xlu0 %v618, 4
        %v798 = vpop.permute.xlu0 %797
        %v800 = vsel %vm784, %v794, %v798
        %801 = vrot.lane.b32.xlu0 %v502, 120
        %v802 = vpop.permute.xlu0 %801
        %803 = vrot.lane.b32.xlu0 %v587, 120
        %v804 = vpop.permute.xlu0 %803
        %805 = vrot.lane.b32.xlu0 %v592, 120
        %v806 = vpop.permute.xlu0 %805
        %v807 = vsel %vm619, %v802, 0
        %v809 = vsel %vm619, %v804, 0
        %v811 = vsel %vm619, %v806, 0
        %813 = vmatprep.subr.mxu0 0.0
        %814 = vmatpush1.xpose.msra.mxu0 %v809
        %815 = vmatprep.subr.mxu0 0.0
        %816 = vmatpush1.xpose.msra.mxu0 %v811
        %817 = vmatprep.subr.mxu0 0.0
        %818 = vmatpush1.xpose.msra.mxu0 0.0
        %819 = vmatprep.subr.mxu0 0.0
        %820 = vmatpush1.xpose.msra.mxu0 0.0
        %821 = vmatprep.subr.mxu0 0.0
        %822 = vmatpush1.xpose.msra.mxu0 0.0
        %823 = vmatprep.subr.mxu0 0.0
        %824 = vmatpush1.xpose.msra.mxu0 0.0
        %825 = vmatprep.subr.mxu0 0.0
        %826 = vmatpush1.xpose.msra.mxu0 0.0
        %827 = vmatprep.subr.mxu0 0.0
        %828 = vmatpush1.xpose.msra.mxu0 0.0
        %829 = vmatprep.subr.mxu0 0.0
        %830 = vmatpush1.xpose.msra.mxu0 0.0
        %831 = vmatprep.subr.mxu0 0.0
        %832 = vmatpush1.xpose.msra.mxu0 0.0
        %833 = vmatprep.subr.mxu0 0.0
        %834 = vmatpush1.xpose.msra.mxu0 0.0
        %835 = vmatprep.subr.mxu0 0.0
        %836 = vmatpush1.xpose.msra.mxu0 0.0
        %837 = vmatprep.subr.mxu0 0.0
        %838 = vmatpush1.xpose.msra.mxu0 0.0
        %839 = vmatprep.subr.mxu0 0.0
        %840 = vmatpush1.xpose.msra.mxu0 0.0
        %841 = vmatprep.subr.mxu0 0.0
        %842 = vmatpush1.xpose.msra.mxu0 0.0
        %843 = vmatprep.subr.mxu0 0.0
        %844 = vmatpush1.xpose.msra.mxu0 0.0
        %845 = vmatprep.subr.mxu0 0.0
        %846 = vmatpush1.xpose.msra.mxu0 0.0
        %847 = vmatprep.subr.mxu0 0.0
        %848 = vmatpush1.xpose.msra.mxu0 0.0
        %849 = vmatprep.subr.mxu0 0.0
        %850 = vmatpush1.xpose.msra.mxu0 0.0
        %851 = vmatprep.subr.mxu0 0.0
        %852 = vmatpush1.xpose.msra.mxu0 0.0
        %853 = vmatprep.subr.mxu0 0.0
        %854 = vmatpush1.xpose.msra.mxu0 0.0
        %855 = vmatprep.subr.mxu0 0.0
        %856 = vmatpush1.xpose.msra.mxu0 0.0
        %857 = vmatprep.subr.mxu0 0.0
        %858 = vmatpush1.xpose.msra.mxu0 0.0
        %859 = vmatprep.subr.mxu0 0.0
        %860 = vmatpush1.xpose.msra.mxu0 0.0
        %861 = vmatprep.subr.mxu0 0.0
        %862 = vmatpush1.xpose.msra.mxu0 0.0
        %863 = vmatprep.subr.mxu0 0.0
        %864 = vmatpush1.xpose.msra.mxu0 0.0
        %865 = vmatprep.subr.mxu0 0.0
        %866 = vmatpush1.xpose.msra.mxu0 0.0
        %867 = vmatprep.subr.mxu0 0.0
        %868 = vmatpush1.xpose.msra.mxu0 0.0
        %869 = vmatprep.subr.mxu0 0.0
        %870 = vmatpush1.xpose.msra.mxu0 0.0
        %871 = vmatprep.subr.mxu0 0.0
        %872 = vmatpush1.xpose.msra.mxu0 0.0
        %873 = vmatprep.subr.mxu0 0.0
        %874 = vmatpush1.xpose.msra.mxu0 0.0
        %875 = vmatprep.subr.mxu0 0.0
        %876 = vmatpush1.xpose.msra.mxu0 0.0
        %877 = vmatprep.mubr.f32.mxu0 0.0
        %878 = vmatmul.mubr.f32.gmra.mrb[0].mxu0 %v807
        %v879 = vpop.f32.mrb[0].mxu0
        %v880 = vadd.f32 0.0, %v879
        %v881 = vpop.f32.mrb[0].mxu0
        %882 = vdwg.mxu0
        %v883 = vmul.f32 %v880, 0.35355338
        %v884 = vsel %vm700, %v883, -inf
        %885 = vmax.xlane.f32.xlu0 %v884
        %v886 = vpop.xlane.xlu0 %885
        %v887 = vsub.f32 %v883, %v886
        %v888 = vmul.f32 %v887, 1.442695
        %v889 = vpow.pop %v888
        %v891 = vsel %vm700, %v889, 0
        %893 = vmatprep.subr.mxu0 0.0
        %894 = vmatpush1.msra.mxu0 %v606
        %895 = vmatprep.subr.mxu0 0.0
        %896 = vmatpush1.msra.mxu0 %v712
        %897 = vmatprep.subr.mxu0 0.0
        %898 = vmatpush1.msra.mxu0 0.0
        %899 = vmatprep.subr.mxu0 0.0
        %900 = vmatpush1.msra.mxu0 0.0
        %901 = vmatprep.subr.mxu0 0.0
        %902 = vmatpush1.msra.mxu0 0.0
        %903 = vmatprep.subr.mxu0 0.0
        %904 = vmatpush1.msra.mxu0 0.0
        %905 = vmatprep.subr.mxu0 0.0
        %906 = vmatpush1.msra.mxu0 0.0
        %907 = vmatprep.subr.mxu0 0.0
        %908 = vmatpush1.msra.mxu0 0.0
        %909 = vmatprep.subr.mxu0 0.0
        %910 = vmatpush1.msra.mxu0 0.0
        %911 = vmatprep.subr.mxu0 0.0
        %912 = vmatpush1.msra.mxu0 0.0
        %913 = vmatprep.subr.mxu0 0.0
        %914 = vmatpush1.msra.mxu0 0.0
        %915 = vmatprep.subr.mxu0 0.0
        %916 = vmatpush1.msra.mxu0 0.0
        %917 = vmatprep.subr.mxu0 0.0
        %918 = vmatpush1.msra.mxu0 0.0
        %919 = vmatprep.subr.mxu0 0.0
        %920 = vmatpush1.msra.mxu0 0.0
        %921 = vmatprep.subr.mxu0 0.0
        %922 = vmatpush1.msra.mxu0 0.0
        %923 = vmatprep.subr.mxu0 0.0
        %924 = vmatpush1.msra.mxu0 0.0
        %925 = vmatprep.subr.mxu0 0.0
        %926 = vmatpush1.msra.mxu0 0.0
        %927 = vmatprep.subr.mxu0 0.0
        %928 = vmatpush1.msra.mxu0 0.0
        %929 = vmatprep.subr.mxu0 0.0
        %930 = vmatpush1.msra.mxu0 0.0
        %931 = vmatprep.subr.mxu0 0.0
        %932 = vmatpush1.msra.mxu0 0.0
        %933 = vmatprep.subr.mxu0 0.0
        %934 = vmatpush1.msra.mxu0 0.0
        %935 = vmatprep.subr.mxu0 0.0
        %936 = vmatpush1.msra.mxu0 0.0
        %937 = vmatprep.subr.mxu0 0.0
        %938 = vmatpush1.msra.mxu0 0.0
        %939 = vmatprep.subr.mxu0 0.0
        %940 = vmatpush1.msra.mxu0 0.0
        %941 = vmatprep.subr.mxu0 0.0
        %942 = vmatpush1.msra.mxu0 0.0
        %943 = vmatprep.subr.mxu0 0.0
        %944 = vmatpush1.msra.mxu0 0.0
        %945 = vmatprep.subr.mxu0 0.0
        %946 = vmatpush1.msra.mxu0 0.0
        %947 = vmatprep.subr.mxu0 0.0
        %948 = vmatpush1.msra.mxu0 0.0
        %949 = vmatprep.subr.mxu0 0.0
        %950 = vmatpush1.msra.mxu0 0.0
        %951 = vmatprep.subr.mxu0 0.0
        %952 = vmatpush1.msra.mxu0 0.0
        %953 = vmatprep.subr.mxu0 0.0
        %954 = vmatpush1.msra.mxu0 0.0
        %955 = vmatprep.subr.mxu0 0.0
        %956 = vmatpush1.msra.mxu0 0.0
        %957 = vmatprep.mubr.f32.mxu0 0.0
        %958 = vmatmul.mubr.f32.gmra.mrb[0].mxu0 %v891
        %v959 = vpop.f32.mrb[0].mxu0
        %v960 = vadd.f32 0.0, %v959
        %v961 = vpop.f32.mrb[0].mxu0
        %962 = vdwg.mxu0
        %vm963 = vcmp.gt.f32.partialorder %v960, 0.0
        %v964 = vsel %vm963, %v960, 1.0
        %966 = vrot.lane.b32.xlu0 %v964, 124
        %v967 = vpop.permute.xlu0 %966
        %v969 = vrcp.pop %v967
        %v970 = vmul.f32 %v960, %v969
        %972 = vrot.lane.b32.xlu0 %v970, 4
        %v973 = vpop.permute.xlu0 %972
        %v975 = vsel %vm963, %v973, %v798
        %977 = vrot.lane.b32.xlu0 %v800, 124
        %v978 = vpop.permute.xlu0 %977
        %v980 = vsel %vm605, %v978, %v975
        %v981 = vld [vmem:[%s8] sm:$0xff]
        %v982 = vld [vmem:[%s9] sm:$0x1]
        %v984 = vlaneseq
        %v985 = vshrl.u32 %v984, 7
        %v986 = vsub.s32 0, %v985
        %v987 = vrot.slane %v982, %v986
        %v990 = vsel %vm619, %v980, 0
        %992 = vmatprep.subr.mxu0 0.0
        %993 = vmatpush1.msra.mxu0 %v981
        %994 = vmatprep.subr.mxu0 0.0
        %995 = vmatpush1.msra.mxu0 0.0
        %996 = vmatprep.subr.mxu0 0.0
        %997 = vmatpush1.msra.mxu0 0.0
        %998 = vmatprep.subr.mxu0 0.0
        %999 = vmatpush1.msra.mxu0 0.0
        %1000 = vmatprep.subr.mxu0 0.0
        %1001 = vmatpush1.msra.mxu0 0.0
        %1002 = vmatprep.subr.mxu0 0.0
        %1003 = vmatpush1.msra.mxu0 0.0
        %1004 = vmatprep.subr.mxu0 0.0
        %1005 = vmatpush1.msra.mxu0 0.0
        %1006 = vmatprep.subr.mxu0 0.0
        %1007 = vmatpush1.msra.mxu0 0.0
        %1008 = vmatprep.subr.mxu0 0.0
        %1009 = vmatpush1.msra.mxu0 0.0
        %1010 = vmatprep.subr.mxu0 0.0
        %1011 = vmatpush1.msra.mxu0 0.0
        %1012 = vmatprep.subr.mxu0 0.0
        %1013 = vmatpush1.msra.mxu0 0.0
        %1014 = vmatprep.subr.mxu0 0.0
        %1015 = vmatpush1.msra.mxu0 0.0
        %1016 = vmatprep.subr.mxu0 0.0
        %1017 = vmatpush1.msra.mxu0 0.0
        %1018 = vmatprep.subr.mxu0 0.0
        %1019 = vmatpush1.msra.mxu0 0.0
        %1020 = vmatprep.subr.mxu0 0.0
        %1021 = vmatpush1.msra.mxu0 0.0
        %1022 = vmatprep.subr.mxu0 0.0
        %1023 = vmatpush1.msra.mxu0 0.0
        %1024 = vmatprep.subr.mxu0 0.0
        %1025 = vmatpush1.msra.mxu0 0.0
        %1026 = vmatprep.subr.mxu0 0.0
        %1027 = vmatpush1.msra.mxu0 0.0
        %1028 = vmatprep.subr.mxu0 0.0
        %1029 = vmatpush1.msra.mxu0 0.0
        %1030 = vmatprep.subr.mxu0 0.0
        %1031 = vmatpush1.msra.mxu0 0.0
        %1032 = vmatprep.subr.mxu0 0.0
        %1033 = vmatpush1.msra.mxu0 0.0
        %1034 = vmatprep.subr.mxu0 0.0
        %1035 = vmatpush1.msra.mxu0 0.0
        %1036 = vmatprep.subr.mxu0 0.0
        %1037 = vmatpush1.msra.mxu0 0.0
        %1038 = vmatprep.subr.mxu0 0.0
        %1039 = vmatpush1.msra.mxu0 0.0
        %1040 = vmatprep.subr.mxu0 0.0
        %1041 = vmatpush1.msra.mxu0 0.0
        %1042 = vmatprep.subr.mxu0 0.0
        %1043 = vmatpush1.msra.mxu0 0.0
        %1044 = vmatprep.subr.mxu0 0.0
        %1045 = vmatpush1.msra.mxu0 0.0
        %1046 = vmatprep.subr.mxu0 0.0
        %1047 = vmatpush1.msra.mxu0 0.0
        %1048 = vmatprep.subr.mxu0 0.0
        %1049 = vmatpush1.msra.mxu0 0.0
        %1050 = vmatprep.subr.mxu0 0.0
        %1051 = vmatpush1.msra.mxu0 0.0
        %1052 = vmatprep.subr.mxu0 0.0
        %1053 = vmatpush1.msra.mxu0 0.0
        %1054 = vmatprep.subr.mxu0 0.0
        %1055 = vmatpush1.msra.mxu0 0.0
        %1056 = vmatprep.mubr.f32.mxu0 0.0
        %1057 = vmatmul.mubr.f32.gmra.mrb[0].mxu0 %v990
        %v1058 = vpop.f32.mrb[0].mxu0
        %v1059 = vadd.f32 %v987, %v1058
        %v1060 = vpop.f32.mrb[0].mxu0
        %1061 = vdwg.mxu0
        %vm1062 = vcmask 261120
        %1063 = vst.msk [vmem:[%s395] sm:$0xff] %vm1062, %v1059
        %s1064 = sand.u32 %s262, 1
        %s1065 = scalar_lea.sflag [#allocation3], %s1064
        %s1066 = sand.u32 %s262, 1
        %s1067 = smul.addr %s1066, 8
        %s1068 = scalar_lea.vmem [#allocation2], %s1067
        // Predicated region
        $region61: #{tpu_custom_call.1} parent=59 // pred_check
          %p1069 = pneg %p272
        $region62: #{tpu_custom_call.1} parent=59 // pred_check_branch
          %1071 = sbr.rel (%p1069) target = $region64
        $region63: #{tpu_custom_call.1} parent=59 // pred_region
          %s1073 = ssub.s32 128, 128
          %1074 = vsyncadd %s1065, %s1073
          %s1075 = smul.addr %s24, 128
          %s1076 = scalar_lea.hbm %s10, %s1075
          %s1078 = sshll.u32 %s1068, 4
          %s1079 = int_to_ptr.vmem [resolvable:$true] %s1078
          %1081 = dma.vmem_to_hbm [thread:$0]  %s1079, 128, %s1076, %s1065
        $region64: #{tpu_custom_call.1} parent=59 // pred_fallthru
          _
      $region60: #{tpu_custom_call.1} parent=5 // pred_fallthru
        _
      %p1082 = scmp.le.s32.totalorder 2, %s19
      // Predicated region
      $region65: #{tpu_custom_call.1} parent=5 // pred_check
        %p1083 = pneg %p1082
      $region66: #{tpu_custom_call.1} parent=5 // pred_check_branch
        %1085 = sbr.rel (%p1083) target = $region68
      $region67: #{tpu_custom_call.1} parent=5 // pred_region
        %s1086 = ssub.s32 %s19, 2
        // Predicated region
        $region69: #{tpu_custom_call.1} parent=67 // pred_check
          %p1087 = pneg %p278
        $region70: #{tpu_custom_call.1} parent=67 // pred_check_branch
          %1089 = sbr.rel (%p1087) target = $region72
        $region71: #{tpu_custom_call.1} parent=67 // pred_region
          %s1090 = sand.u32 %s263, 1
          %s1091 = scalar_lea.sflag [#allocation3], %s1090
          %s1092 = sand.u32 %s263, 1
          %s1093 = smul.addr %s1092, 8
          %s1094 = scalar_lea.vmem [#allocation2], %s1093
          %1095 = dma.done %s1091, 128
        $region72: #{tpu_custom_call.1} parent=67 // pred_fallthru
          _
      $region68: #{tpu_custom_call.1} parent=5 // pred_fallthru
        _
    $region6: #{tpu_custom_call.1} parent=1 // loop_footer
      %s23 = sadd.s32 1, %s19
    $region7: #{tpu_custom_call.1} parent=1 // loop_footer_branch
      %18 = sbr.rel target = $region3
    $region8: #{tpu_custom_call.1} parent=1 // loop_exit
      _
    %1096 = vsyncpa [#allocation3], 1
    %s1097 = scalar_lea.sflag [#allocation3], 1
    %1098 = vsyncpa %s1097, 1

</llo_original>
